<compile_context>
chip_gen: v6e
topology: v6e:2x2x1
jax: 0.10.0
libtpu: 0.0.40
codegen_flags: <defaults>
</compile_context>

<pallas_src>
import functools

import jax
import jax.numpy as jnp
from jax.experimental import pallas as pl
from jax.experimental.pallas import tpu as pltpu


def _ce_label_smooth_kernel(x_ref, xt_ref, o_ref,
                            m_acc, l_acc, s_acc,
                            *, epsilon, num_classes, class_tile):
    """Online (class-tiled) label-smoothed cross entropy."""
    j = pl.program_id(1)
    last = pl.num_programs(1) - 1

    @pl.when(j == 0)
    def _():
        m_acc[...] = jnp.full(m_acc.shape, -jnp.inf, jnp.float32)
        l_acc[...] = jnp.zeros(l_acc.shape, jnp.float32)
        s_acc[...] = jnp.zeros(s_acc.shape, jnp.float32)

    x = x_ref[...].astype(jnp.float32)          # (TB, TC) cast in-kernel

    def accumulate(x_for_max, x_for_sum):
        m_prev = m_acc[...]
        m_new = jnp.maximum(m_prev, jnp.max(x_for_max, axis=1, keepdims=True))
        # Guard: an all -inf prefix would otherwise give exp(-inf - -inf) = NaN.
        m_safe = jnp.where(m_new == -jnp.inf, jnp.zeros_like(m_new), m_new)
        l_acc[...] = (l_acc[...] * jnp.exp(m_prev - m_safe)
                      + jnp.sum(jnp.exp(x_for_max - m_safe),
                                axis=1, keepdims=True))
        m_acc[...] = m_new
        s_acc[...] = s_acc[...] + jnp.sum(x_for_sum, axis=1, keepdims=True)

    rem = num_classes % class_tile              # static Python int
    if rem == 0:                                # no padded columns anywhere
        accumulate(x, x)
    else:
        # Interior tiles: unmasked fast path.
        @pl.when(j < last)
        def _():
            accumulate(x, x)

        # Last tile only: mask the padded class columns (tile-local iota).
        @pl.when(j == last)
        def _():
            col = jax.lax.broadcasted_iota(jnp.int32, x.shape, 1)
            valid = col < rem
            accumulate(jnp.where(valid, x, -jnp.inf),
                       jnp.where(valid, x, 0.0))

    @pl.when(j == last)
    def _():
        log_z = m_acc[...] + jnp.log(l_acc[...])             # (TB, 1)
        x_t = xt_ref[...].astype(jnp.float32)                # (TB, 1) target logit
        o_ref[...] = ((1.0 - epsilon) * (log_z - x_t)
                      + (epsilon / num_classes)
                      * (num_classes * log_z - s_acc[...]))


def _vmem_capacity_bytes():
    try:
        return int(pltpu.get_tpu_info().vmem_capacity_bytes)
    except Exception:
        return 64 * 1024 * 1024            # v7x-safe fallback


def _round_up8(n):
    return ((int(n) + 7) // 8) * 8


def _pick_tiles(B, C, itemsize, budget_bytes, vmem_cap_bytes):
    """Batch/class tile sizes under a per-step VMEM budget."""
    # Class tile: full rows for moderate C; online-lse tiling for huge vocab.
    if C <= 8192:
        tc = C
    elif vmem_cap_bytes >= (96 << 20):     # v5e / v6e: 128 MiB VMEM
        tc = 8192                          # 4-8 MiB per step, amortizes overhead
    else:                                  # v7x: 64 MiB VMEM
        tc = 2048

    # Honest per-row live bytes: double-buffered native-dtype input + ~4
    # f32-width temporaries (f32 cast, exp tile, masked copies / iota).
    per_row = tc * (2 * itemsize + 4 * 4)
    tb = budget_bytes // max(per_row, 1)
    tb = max(8, min(512, (tb // 8) * 8))

    # Never collapse the "parallel" batch axis to one tile when B allows it:
    # v7x needs >= 2 (ideally >= 4) batch tiles to use its second TensorCore.
    if B >= 32:
        tb = min(tb, max(8, _round_up8(pl.cdiv(B, 4))))
    elif B >= 16:
        tb = min(tb, max(8, _round_up8(pl.cdiv(B, 2))))
    tb = min(tb, _round_up8(B))
    return int(tb), int(tc)


def cross_entropy_label_smooth(logits, targets, *, epsilon=0.1, reduction=True,
                               batch_tile=None, class_tile=None):
    """Pallas equivalent of CrossEntropyLabelSmooth.forward.

    Args:
      logits:  (B, C) float array (pre-softmax scores), any float dtype.
      targets: (B,)   int array of class indices (must be in [0, C); an
               ignore_index like -100 is NOT supported, matching the module).
    Returns:
      scalar mean loss if reduction else (B,) per-sample loss (float32).
    """
    B, C = logits.shape
    t = targets.astype(jnp.int32)

    # Gather the target logit once per row outside the class loop (B elements,
    # noise vs. B*C); removes the iota/compare/select chain from the kernel.
    x_t = jnp.take_along_axis(logits, t[:, None], axis=1)      # (B, 1), native dtype

    itemsize = jnp.dtype(logits.dtype).itemsize
    cap = _vmem_capacity_bytes()
    vmem_limit = min(3 * cap // 4, 96 * 1024 * 1024)   # 48 MiB on v7x, 96 MiB on v5e/v6e
    budget = vmem_limit // 2                           # per-step live-tile budget

    tb_auto, tc_auto = _pick_tiles(B, C, itemsize, budget, cap)
    tb = int(batch_tile) if batch_tile is not None else tb_auto
    tc = int(class_tile) if class_tile is not None else tc_auto

    grid = (pl.cdiv(B, tb), pl.cdiv(C, tc))            # reduction (class) axis last

    kernel = functools.partial(
        _ce_label_smooth_kernel,
        epsilon=float(epsilon),
        num_classes=int(C),
        class_tile=int(tc),
    )

    cost = pl.CostEstimate(
        flops=int(5 * B * C),
        transcendentals=int(B * C),
        bytes_accessed=int(B * C * itemsize + B * (itemsize + 4) + B * 4),
    )

    per_sample = pl.pallas_call(
        kernel,
        out_shape=jax.ShapeDtypeStruct((B, 1), jnp.float32),
        grid_spec=pl.GridSpec(
            grid=grid,
            in_specs=[
                pl.BlockSpec((tb, tc), lambda i, j: (i, j)),   # logits (native dtype)
                pl.BlockSpec((tb, 1), lambda i, j: (i, 0)),    # target logits
            ],
            out_specs=pl.BlockSpec((tb, 1), lambda i, j: (i, 0)),
            scratch_shapes=[pltpu.VMEM((tb, 1), jnp.float32)] * 3,  # m, l, sum_x
        ),
        compiler_params=pltpu.CompilerParams(
            dimension_semantics=("parallel", "arbitrary"),
            vmem_limit_bytes=int(vmem_limit),
        ),
        cost_estimate=cost,
    )(logits, x_t)                                       # no wrapper-side f32 cast

    per_sample = per_sample[:, 0]
    return jnp.mean(per_sample) if reduction else per_sample


def _reference(logits, targets, epsilon=0.1, reduction=True):
    """Pure-JAX reference mirroring the PyTorch module."""
    _, C = logits.shape
    log_probs = jax.nn.log_softmax(logits.astype(jnp.float32), axis=1)
    onehot = jax.nn.one_hot(targets, C, dtype=jnp.float32)
    smoothed = (1.0 - epsilon) * onehot + epsilon / C
    loss = jnp.sum(-smoothed * log_probs, axis=1)
    return jnp.mean(loss) if reduction else loss


if __name__ == "__main__":
    key = jax.random.PRNGKey(0)
    k1, k2, k3, k4 = jax.random.split(key, 4)

    # Small shapes consistent with the module: batch=8, num_classes=16.
    batch, num_classes = 8, 16
    logits_f32 = jax.random.normal(k1, (batch, num_classes), dtype=jnp.float32)
    targets = jax.random.randint(k2, (batch,), 0, num_classes, dtype=jnp.int32)

    # reduction=True (default module behavior), f32 logits.
    loss = cross_entropy_label_smooth(logits_f32, targets, epsilon=0.1, reduction=True)
    loss = jax.block_until_ready(loss)
    ref = _reference(logits_f32, targets, 0.1, True)
    assert jnp.allclose(loss, ref, atol=1e-4, rtol=1e-4), (loss, ref)

    # reduction=False path.
    loss_vec = cross_entropy_label_smooth(logits_f32, targets, epsilon=0.1, reduction=False)
    loss_vec = jax.block_until_ready(loss_vec)
    ref_vec = _reference(logits_f32, targets, 0.1, False)
    assert jnp.allclose(loss_vec, ref_vec, atol=1e-4, rtol=1e-4), (loss_vec, ref_vec)

    # Native bf16 logits go straight to the kernel (no wrapper f32 pre-cast).
    logits_bf16 = logits_f32.astype(jnp.bfloat16)
    loss_bf16 = cross_entropy_label_smooth(logits_bf16, targets, epsilon=0.1, reduction=True)
    loss_bf16 = jax.block_until_ready(loss_bf16)
    ref_bf16 = _reference(logits_bf16.astype(jnp.float32), targets, 0.1, True)
    assert jnp.allclose(loss_bf16, ref_bf16, atol=1e-4, rtol=1e-4), (loss_bf16, ref_bf16)

    # Multi-tile path: class tiling with a masked last tile (C % tc != 0) and a
    # padded last batch tile (B % tb != 0) to exercise the online logsumexp.
    B2, C2 = 40, 300
    logits2 = jax.random.normal(k3, (B2, C2), dtype=jnp.float32)
    targets2 = jax.random.randint(k4, (B2,), 0, C2, dtype=jnp.int32)
    loss2 = cross_entropy_label_smooth(logits2, targets2, epsilon=0.1,
                                       reduction=False, batch_tile=16, class_tile=128)
    loss2 = jax.block_until_ready(loss2)
    ref2 = _reference(logits2, targets2, 0.1, False)
    assert jnp.allclose(loss2, ref2, atol=1e-4, rtol=1e-4), (loss2, ref2)

    print("KERNEL_OK")
</pallas_src>

<mosaic_0001>
module attributes {stable_mosaic.version = 11 : i64} {
  func.func @_ce_label_smooth_kernel(%arg0: i32, %arg1: i32, %arg2: memref<8x16xf32, #tpu.memory_space<vmem>>, %arg3: memref<8x1xf32, #tpu.memory_space<vmem>>, %arg4: memref<8x1xf32, #tpu.memory_space<vmem>>, %arg5: memref<8x1xf32, #tpu.memory_space<vmem>>, %arg6: memref<8x1xf32, #tpu.memory_space<vmem>>, %arg7: memref<8x1xf32, #tpu.memory_space<vmem>>) attributes {dimension_semantics = [#tpu.dimension_semantics<parallel>, #tpu.dimension_semantics<arbitrary>], iteration_bounds = array<i64: 1, 1>, scalar_prefetch = 0 : i64, scratch_operands = 3 : i64, tpu.core_type = #tpu.core_type<tc>, window_params = [{transform_indices = @transform_0, window_bounds = array<i64: 8, 16>}, {transform_indices = @transform_1, window_bounds = array<i64: 8, 1>}, {transform_indices = @transform_2, window_bounds = array<i64: 8, 1>}]} {
    %c0_i32 = arith.constant 0 : i32
    %0 = arith.cmpi eq, %arg1, %c0_i32 : i32
    %1 = arith.extui %0 : i1 to i32
    %c0_i32_0 = arith.constant 0 : i32
    %2 = arith.cmpi ne, %1, %c0_i32_0 : i32
    scf.if %2 {
      %cst_20 = arith.constant 0xFF800000 : f32
      %32 = vector.broadcast %cst_20 : f32 to vector<8x1xf32>
      %c0_21 = arith.constant 0 : index
      %c0_22 = arith.constant 0 : index
      %33 = vector.load %arg5[%c0_21, %c0_22] : memref<8x1xf32, #tpu.memory_space<vmem>>, vector<8x1xf32>
      tpu.vector_store %arg5[%c0_21, %c0_22], %32 {strides = array<i32>} : memref<8x1xf32, #tpu.memory_space<vmem>>, vector<8x1xf32>,
      %cst_23 = arith.constant 0.000000e+00 : f32
      %34 = vector.broadcast %cst_23 : f32 to vector<8x1xf32>
      %c0_24 = arith.constant 0 : index
      %c0_25 = arith.constant 0 : index
      %35 = vector.load %arg6[%c0_24, %c0_25] : memref<8x1xf32, #tpu.memory_space<vmem>>, vector<8x1xf32>
      tpu.vector_store %arg6[%c0_24, %c0_25], %34 {strides = array<i32>} : memref<8x1xf32, #tpu.memory_space<vmem>>, vector<8x1xf32>,
      %cst_26 = arith.constant 0.000000e+00 : f32
      %36 = vector.broadcast %cst_26 : f32 to vector<8x1xf32>
      %c0_27 = arith.constant 0 : index
      %c0_28 = arith.constant 0 : index
      %37 = vector.load %arg7[%c0_27, %c0_28] : memref<8x1xf32, #tpu.memory_space<vmem>>, vector<8x1xf32>
      tpu.vector_store %arg7[%c0_27, %c0_28], %36 {strides = array<i32>} : memref<8x1xf32, #tpu.memory_space<vmem>>, vector<8x1xf32>,
    } else {
    }
    %c0 = arith.constant 0 : index
    %c0_1 = arith.constant 0 : index
    %3 = vector.load %arg2[%c0, %c0_1] : memref<8x16xf32, #tpu.memory_space<vmem>>, vector<8x16xf32>
    %c0_2 = arith.constant 0 : index
    %c0_3 = arith.constant 0 : index
    %4 = vector.load %arg5[%c0_2, %c0_3] : memref<8x1xf32, #tpu.memory_space<vmem>>, vector<8x1xf32>
    %cst = arith.constant dense<0xFF800000> : vector<8xf32>
    %5 = vector.multi_reduction <maximumf>, %3, %cst [1] : vector<8x16xf32> to vector<8xf32>
    %6 = vector.shape_cast %5 : vector<8xf32> to vector<8x1xf32>
    %7 = arith.maximumf %4, %6 : vector<8x1xf32>
    %cst_4 = arith.constant 0xFF800000 : f32
    %8 = vector.broadcast %cst_4 : f32 to vector<8x1xf32>
    %9 = arith.cmpf oeq, %7, %8 : vector<8x1xf32>
    %cst_5 = arith.constant 0.000000e+00 : f32
    %10 = vector.broadcast %cst_5 : f32 to vector<8x1xf32>
    %11 = arith.select %9, %10, %7 : vector<8x1xi1>, vector<8x1xf32>
    %c0_6 = arith.constant 0 : index
    %c0_7 = arith.constant 0 : index
    %12 = vector.load %arg6[%c0_6, %c0_7] : memref<8x1xf32, #tpu.memory_space<vmem>>, vector<8x1xf32>
    %13 = arith.subf %4, %11 : vector<8x1xf32>
    %14 = math.exp %13 : vector<8x1xf32>
    %15 = arith.mulf %12, %14 : vector<8x1xf32>
    %16 = vector.broadcast %11 : vector<8x1xf32> to vector<8x16xf32>
    %17 = arith.subf %3, %16 : vector<8x16xf32>
    %18 = math.exp %17 : vector<8x16xf32>
    %cst_8 = arith.constant dense<0.000000e+00> : vector<8xf32>
    %19 = vector.multi_reduction <add>, %18, %cst_8 [1] : vector<8x16xf32> to vector<8xf32>
    %20 = vector.shape_cast %19 : vector<8xf32> to vector<8x1xf32>
    %21 = arith.addf %15, %20 : vector<8x1xf32>
    %c0_9 = arith.constant 0 : index
    %c0_10 = arith.constant 0 : index
    %22 = vector.load %arg6[%c0_9, %c0_10] : memref<8x1xf32, #tpu.memory_space<vmem>>, vector<8x1xf32>
    tpu.vector_store %arg6[%c0_9, %c0_10], %21 {strides = array<i32>} : memref<8x1xf32, #tpu.memory_space<vmem>>, vector<8x1xf32>,
    %c0_11 = arith.constant 0 : index
    %c0_12 = arith.constant 0 : index
    %23 = vector.load %arg5[%c0_11, %c0_12] : memref<8x1xf32, #tpu.memory_space<vmem>>, vector<8x1xf32>
    tpu.vector_store %arg5[%c0_11, %c0_12], %7 {strides = array<i32>} : memref<8x1xf32, #tpu.memory_space<vmem>>, vector<8x1xf32>,
    %c0_13 = arith.constant 0 : index
    %c0_14 = arith.constant 0 : index
    %24 = vector.load %arg7[%c0_13, %c0_14] : memref<8x1xf32, #tpu.memory_space<vmem>>, vector<8x1xf32>
    %cst_15 = arith.constant dense<0.000000e+00> : vector<8xf32>
    %25 = vector.multi_reduction <add>, %3, %cst_15 [1] : vector<8x16xf32> to vector<8xf32>
    %26 = vector.shape_cast %25 : vector<8xf32> to vector<8x1xf32>
    %27 = arith.addf %24, %26 : vector<8x1xf32>
    %c0_16 = arith.constant 0 : index
    %c0_17 = arith.constant 0 : index
    %28 = vector.load %arg7[%c0_16, %c0_17] : memref<8x1xf32, #tpu.memory_space<vmem>>, vector<8x1xf32>
    tpu.vector_store %arg7[%c0_16, %c0_17], %27 {strides = array<i32>} : memref<8x1xf32, #tpu.memory_space<vmem>>, vector<8x1xf32>,
    %c0_i32_18 = arith.constant 0 : i32
    %29 = arith.cmpi eq, %arg1, %c0_i32_18 : i32
    %30 = arith.extui %29 : i1 to i32
    %c0_i32_19 = arith.constant 0 : i32
    %31 = arith.cmpi ne, %30, %c0_i32_19 : i32
    scf.if %31 {
      %c0_20 = arith.constant 0 : index
      %c0_21 = arith.constant 0 : index
      %32 = vector.load %arg5[%c0_20, %c0_21] : memref<8x1xf32, #tpu.memory_space<vmem>>, vector<8x1xf32>
      %c0_22 = arith.constant 0 : index
      %c0_23 = arith.constant 0 : index
      %33 = vector.load %arg6[%c0_22, %c0_23] : memref<8x1xf32, #tpu.memory_space<vmem>>, vector<8x1xf32>
      %34 = math.log %33 : vector<8x1xf32>
      %35 = arith.addf %32, %34 : vector<8x1xf32>
      %c0_24 = arith.constant 0 : index
      %c0_25 = arith.constant 0 : index
      %36 = vector.load %arg3[%c0_24, %c0_25] : memref<8x1xf32, #tpu.memory_space<vmem>>, vector<8x1xf32>
      %37 = arith.subf %35, %36 : vector<8x1xf32>
      %cst_26 = arith.constant 0.899999976 : f32
      %38 = vector.broadcast %cst_26 : f32 to vector<8x1xf32>
      %39 = arith.mulf %38, %37 : vector<8x1xf32>
      %cst_27 = arith.constant 1.600000e+01 : f32
      %40 = vector.broadcast %cst_27 : f32 to vector<8x1xf32>
      %41 = arith.mulf %40, %35 : vector<8x1xf32>
      %c0_28 = arith.constant 0 : index
      %c0_29 = arith.constant 0 : index
      %42 = vector.load %arg7[%c0_28, %c0_29] : memref<8x1xf32, #tpu.memory_space<vmem>>, vector<8x1xf32>
      %43 = arith.subf %41, %42 : vector<8x1xf32>
      %cst_30 = arith.constant 6.250000e-03 : f32
      %44 = vector.broadcast %cst_30 : f32 to vector<8x1xf32>
      %45 = arith.mulf %44, %43 : vector<8x1xf32>
      %46 = arith.addf %39, %45 : vector<8x1xf32>
      %c0_31 = arith.constant 0 : index
      %c0_32 = arith.constant 0 : index
      %47 = vector.load %arg4[%c0_31, %c0_32] : memref<8x1xf32, #tpu.memory_space<vmem>>, vector<8x1xf32>
      tpu.vector_store %arg4[%c0_31, %c0_32], %46 {strides = array<i32>} : memref<8x1xf32, #tpu.memory_space<vmem>>, vector<8x1xf32>,
    } else {
    }
    return
  }
  func.func @transform_0(%arg0: i32, %arg1: i32) -> (i32, i32) {
    %c0_i32 = arith.constant 0 : i32
    return %arg0, %arg1 : i32, i32
  }
  func.func @transform_1(%arg0: i32, %arg1: i32) -> (i32, i32) {
    %c0_i32 = arith.constant 0 : i32
    %c0_i32_0 = arith.constant 0 : i32
    return %arg0, %c0_i32 : i32, i32
  }
  func.func @transform_2(%arg0: i32, %arg1: i32) -> (i32, i32) {
    %c0_i32 = arith.constant 0 : i32
    %c0_i32_0 = arith.constant 0 : i32
    return %arg0, %c0_i32 : i32, i32
  }
}

</mosaic_0001>

<llo_original>
// kernel: tpu_custom_call.1
$region0: #{tpu_custom_call.1}
  #allocation0 [shape = 'u32[]', space=smem, size = 0x4, offset = 0x4, fixed_abs, tag = 'smem constant byte address 0x4 - core index']
  #allocation1 [shape = 'u32[144,128]{1,0:T(1,128)}', space=vmem, size = 0x12000, scoped, tag = 'internal scratch']
  #allocation2 [shape = 'f32[8,1]{1,0:T(8,128)}', space=vmem, size = 0x1000, scoped, tag = 'scratch operand']
  #allocation3 [shape = 'f32[8,1]{1,0:T(8,128)}', space=vmem, size = 0x1000, scoped, tag = 'scratch operand']
  #allocation4 [shape = 'f32[8,1]{1,0:T(8,128)}', space=vmem, size = 0x1000, scoped, tag = 'scratch operand']
  %s0 = inlined_call_operand.vmem [shape: f32[8,16], index: 0, kind: input, shape index: {}]
  %s1 = inlined_call_operand.vmem [shape: f32[8,1], index: 1, kind: input, shape index: {}]
  %s2 = inlined_call_operand.vmem [shape: f32[8,1], index: 2, kind: output, shape index: {}]
  %s3 = sld [smem:[#allocation0]]
  $region26: #{tpu_custom_call.1} parent=0
    _
  %s5 = ssub.s32 1, %s3
  %s6 = scalar_select 0, %s5, %s3
  // Predicated region
  $region2: #{tpu_custom_call.1} parent=0 // pred_check
    _
  $region3: #{tpu_custom_call.1} parent=0 // pred_check_branch
    %8 = sbr.rel (0) target = $region5
  $region4: #{tpu_custom_call.1} parent=0 // pred_region
    _
  $region5: #{tpu_custom_call.1} parent=0 // pred_fallthru
    _
  // Predicated region
  $region6: #{tpu_custom_call.1} parent=0 // pred_check
    _
  $region7: #{tpu_custom_call.1} parent=0 // pred_check_branch
    %10 = sbr.rel (0) target = $region9
  $region8: #{tpu_custom_call.1} parent=0 // pred_region
    _
  $region9: #{tpu_custom_call.1} parent=0 // pred_fallthru
    _
  %p11 = scmp.eq.s32.totalorder 0, 0
  // Predicated region
  $region10: #{tpu_custom_call.1} parent=0 // pred_check
    %p12 = pneg %p11
  $region11: #{tpu_custom_call.1} parent=0 // pred_check_branch
    %14 = sbr.rel (%p12) target = $region13
  $region12: #{tpu_custom_call.1} parent=0 // pred_region
    %vm15 = vcmask 7168
    %16 = vst.msk [vmem:[#allocation2] sm:$0xff] %vm15, -inf
    %17 = vst.msk [vmem:[#allocation3] sm:$0xff] %vm15, 0.0
    %18 = vst.msk [vmem:[#allocation4] sm:$0xff] %vm15, 0.0
  $region13: #{tpu_custom_call.1} parent=0 // pred_fallthru
    _
  %v19 = vld [vmem:[%s0] sm:$0xff]
  %v20 = vld [vmem:[#allocation2] sm:$0xff]
  %vm21 = vcmask 130048
  %v22 = vsel %vm21, %v19, -inf
  %23 = vmax.xlane.f32.xlu0 %v22
  %v24 = vpop.xlane.xlu0 %23
  %v25 = vmax.f32 %v20, %v24
  %vm26 = vcmp.eq.f32.partialorder %v25, -inf
  %v27 = vsel %vm26, 0.0, %v25
  %v28 = vld [vmem:[#allocation3] sm:$0xff]
  %v29 = vsub.f32 %v20, %v27
  %v30 = vmul.f32 %v29, 1.442695
  %v31 = vpow.pop %v30
  %v32 = vmul.f32 %v28, %v31
  %34 = vset.pattern.permute.xlu0 0
  %35 = vperm.xlu0 %34, %v27
  %v36 = vpop.permute.xlu0 %35
  %v38 = vsub.f32 %v19, %v36
  %v39 = vmul.f32 %v38, 1.442695
  %v40 = vpow.pop %v39
  %v41 = vsel %vm21, %v40, 0.0
  %42 = vadd.xlane.f32.xlu0 %v41
  %v43 = vpop.xlane.xlu0 %42
  %v44 = vadd.f32 %v32, %v43
  %vm45 = vcmask 7168
  %46 = vst.msk [vmem:[#allocation3] sm:$0xff] %vm45, %v44
  %47 = vst.msk [vmem:[#allocation2] sm:$0xff] %vm45, %v25
  %v48 = vld [vmem:[#allocation4] sm:$0xff]
  %v49 = vsel %vm21, %v19, 0.0
  %50 = vadd.xlane.f32.xlu0 %v49
  %v51 = vpop.xlane.xlu0 %50
  %v52 = vadd.f32 %v48, %v51
  %53 = vst.msk [vmem:[#allocation4] sm:$0xff] %vm45, %v52
  // Predicated region
  $region14: #{tpu_custom_call.1} parent=0 // pred_check
    %p54 = pneg %p11
  $region15: #{tpu_custom_call.1} parent=0 // pred_check_branch
    %56 = sbr.rel (%p54) target = $region17
  $region16: #{tpu_custom_call.1} parent=0 // pred_region
    %v57 = vld [vmem:[#allocation2] sm:$0xff]
    %v58 = vld [vmem:[#allocation3] sm:$0xff]
    %v59 = vlog2.pop %v58
    %v60 = vmul.f32 %v59, 0.6931472
    %v61 = vadd.f32 %v57, %v60
    %v62 = vld [vmem:[%s1] sm:$0xff]
    %v63 = vsub.f32 %v61, %v62
    %v64 = vmul.f32 %v63, 0.9
    %v65 = vmul.f32 %v61, 16.0
    %v66 = vld [vmem:[#allocation4] sm:$0xff]
    %v67 = vsub.f32 %v65, %v66
    %v68 = vmul.f32 %v67, 0.00625
    %v69 = vadd.f32 %v64, %v68
    %70 = vst.msk [vmem:[%s2] sm:$0xff] %vm45, %v69
  $region17: #{tpu_custom_call.1} parent=0 // pred_fallthru
    _
  // Predicated region
  $region18: #{tpu_custom_call.1} parent=0 // pred_check
    _
  $region19: #{tpu_custom_call.1} parent=0 // pred_check_branch
    %72 = sbr.rel (0) target = $region21
  $region20: #{tpu_custom_call.1} parent=0 // pred_region
    _
  $region21: #{tpu_custom_call.1} parent=0 // pred_fallthru
    _
  // Predicated region
  $region22: #{tpu_custom_call.1} parent=0 // pred_check
    _
  $region23: #{tpu_custom_call.1} parent=0 // pred_check_branch
    %74 = sbr.rel (0) target = $region25
  $region24: #{tpu_custom_call.1} parent=0 // pred_region
    _
  $region25: #{tpu_custom_call.1} parent=0 // pred_fallthru
    _

</llo_original>
